<compile_context>
chip_gen: v7x
topology: tpu7x:2x2x1
jax: 0.10.0
libtpu: 0.0.40
codegen_flags: <defaults>
</compile_context>

<pallas_src>
import functools
import math

import jax
import jax.numpy as jnp
from jax import lax
from jax.experimental import pallas as pl
from jax.experimental.pallas import tpu as pltpu


_VMEM_LIMIT = 64 * 1024 * 1024   # safe on v7x (64 MiB VMEM); v5e/v6e have 128 MiB


# ----------------------------- tiling helper ---------------------------------

def _pick_tile(dim, target, floor=128):
    """Largest tile <= target (power-of-two steps) that evenly divides `dim`;
    falls back to the full dim (single block) when nothing divides."""
    if dim <= target:
        return dim
    t = target
    while t >= floor:
        if dim % t == 0:
            return t
        t //= 2
    return dim


# ----------------------------- Pallas kernels --------------------------------

def _matmul_kernel(x_ref, w_ref, o_ref, acc_ref):
    """One (tm, tn) tile of x @ w.T, accumulated over the k grid axis.

    x_ref: (tm, tk); w_ref: (tn, tk) in PyTorch Linear layout (out, in)."""
    @pl.when(pl.program_id(2) == 0)
    def _():
        acc_ref[...] = jnp.zeros_like(acc_ref)

    acc_ref[...] += lax.dot_general(
        x_ref[...], w_ref[...],
        dimension_numbers=(((1,), (1,)), ((), ())),   # contract K with K (no .T)
        preferred_element_type=jnp.float32)

    @pl.when(pl.program_id(2) == pl.num_programs(2) - 1)
    def _():
        o_ref[...] = acc_ref[...].astype(o_ref.dtype)


def _matmul_bias_kernel(x_ref, w_ref, b_ref, o_ref, acc_ref):
    """Same as _matmul_kernel, adds a (1, tn) bias tile at finalize."""
    @pl.when(pl.program_id(2) == 0)
    def _():
        acc_ref[...] = jnp.zeros_like(acc_ref)

    acc_ref[...] += lax.dot_general(
        x_ref[...], w_ref[...],
        dimension_numbers=(((1,), (1,)), ((), ())),
        preferred_element_type=jnp.float32)

    @pl.when(pl.program_id(2) == pl.num_programs(2) - 1)
    def _():
        o_ref[...] = (acc_ref[...] + b_ref[...]).astype(o_ref.dtype)


def _attention_kernel(q_ref, kv_ref, o_ref, *, heads, dim_head, scale):
    """Softmax attention for one (batch, q-row-block).

    q_ref : (1, tq, 3*D)  qkv rows of this q block
    kv_ref: (1, N,  3*D)  all qkv rows of this batch (keys/values source)
    o_ref : (1, tq, D)    output already in 'b n (h d)' layout
    The 3*D channel axis is laid out as (qkv, head, dim_head)."""
    d_model = heads * dim_head
    qkv_q = q_ref[0]       # (tq, 3D)
    qkv_kv = kv_ref[0]     # (N, 3D)

    for h in range(heads):
        lo = h * dim_head
        hi = lo + dim_head
        # scale folded into q: O(tq*Dh) multiplies instead of O(tq*N)
        q = qkv_q[:, lo:hi] * scale                              # (tq, Dh)
        k = qkv_kv[:, d_model + lo:d_model + hi]                 # (N, Dh)
        v = qkv_kv[:, 2 * d_model + lo:2 * d_model + hi]         # (N, Dh)

        # contract on Dh directly -- no explicit k transpose
        dots = lax.dot_general(q, k, (((1,), (1,)), ((), ())),
                               preferred_element_type=jnp.float32)  # (tq, N)
        dots = dots - jnp.max(dots, axis=-1, keepdims=True)
        p = jnp.exp(dots)
        inv_l = pl.reciprocal(jnp.sum(p, axis=-1, keepdims=True), approx=True)
        attn = p * inv_l
        o_ref[0, :, lo:hi] = jnp.dot(
            attn, v, preferred_element_type=jnp.float32).astype(o_ref.dtype)


# ------------------------------ wrappers --------------------------------------

def pallas_matmul(x, w, *, tm=256, tn=256, tk=512):
    """x: (M, K); w: (Nout, K) (PyTorch layout). Returns x @ w.T as (M, Nout)."""
    M, K = x.shape
    Nout, K2 = w.shape
    assert K == K2
    tm = _pick_tile(M, tm)
    tn = _pick_tile(Nout, tn)
    tk = _pick_tile(K, tk)
    grid = (M // tm, Nout // tn, K // tk)
    return pl.pallas_call(
        _matmul_kernel,
        out_shape=jax.ShapeDtypeStruct((M, Nout), x.dtype),
        grid_spec=pltpu.PrefetchScalarGridSpec(
            num_scalar_prefetch=0,
            grid=grid,
            in_specs=[pl.BlockSpec((tm, tk), lambda i, j, k: (i, k)),
                      pl.BlockSpec((tn, tk), lambda i, j, k: (j, k))],
            out_specs=pl.BlockSpec((tm, tn), lambda i, j, k: (i, j)),
            scratch_shapes=[pltpu.VMEM((tm, tn), jnp.float32)]),
        compiler_params=pltpu.CompilerParams(
            dimension_semantics=("parallel", "parallel", "arbitrary"),
            vmem_limit_bytes=_VMEM_LIMIT),
    )(x, w)


def pallas_matmul_bias(x, w, b, *, tm=256, tn=256, tk=512):
    """x: (M, K); w: (Nout, K); b: (Nout,). Returns x @ w.T + b as (M, Nout)."""
    M, K = x.shape
    Nout, K2 = w.shape
    assert K == K2
    tm = _pick_tile(M, tm)
    tn = _pick_tile(Nout, tn)
    tk = _pick_tile(K, tk)
    grid = (M // tm, Nout // tn, K // tk)
    return pl.pallas_call(
        _matmul_bias_kernel,
        out_shape=jax.ShapeDtypeStruct((M, Nout), x.dtype),
        grid_spec=pltpu.PrefetchScalarGridSpec(
            num_scalar_prefetch=0,
            grid=grid,
            in_specs=[pl.BlockSpec((tm, tk), lambda i, j, k: (i, k)),
                      pl.BlockSpec((tn, tk), lambda i, j, k: (j, k)),
                      pl.BlockSpec((1, tn), lambda i, j, k: (0, j))],
            out_specs=pl.BlockSpec((tm, tn), lambda i, j, k: (i, j)),
            scratch_shapes=[pltpu.VMEM((tm, tn), jnp.float32)]),
        compiler_params=pltpu.CompilerParams(
            dimension_semantics=("parallel", "parallel", "arbitrary"),
            vmem_limit_bytes=_VMEM_LIMIT),
    )(x, w, b.reshape(1, Nout))


def pallas_attention(qkv, *, heads, dim_head, scale, tq_target=512):
    """qkv: (B, N, 3*D) fused projection output. Returns (B, N, D) in
    'b n (h d)' layout (output transpose fused into the kernel)."""
    B, N, c3d = qkv.shape
    d_model = heads * dim_head
    tq = _pick_tile(N, tq_target, floor=8)
    grid = (B, N // tq)
    kernel = functools.partial(_attention_kernel, heads=heads,
                               dim_head=dim_head, scale=scale)
    return pl.pallas_call(
        kernel,
        out_shape=jax.ShapeDtypeStruct((B, N, d_model), qkv.dtype),
        grid_spec=pltpu.PrefetchScalarGridSpec(
            num_scalar_prefetch=0,
            grid=grid,
            in_specs=[pl.BlockSpec((1, tq, c3d), lambda b, qi: (b, qi, 0)),
                      pl.BlockSpec((1, N, c3d), lambda b, qi: (b, 0, 0))],
            out_specs=pl.BlockSpec((1, tq, d_model), lambda b, qi: (b, qi, 0))),
        compiler_params=pltpu.CompilerParams(
            dimension_semantics=("parallel", "parallel"),
            vmem_limit_bytes=_VMEM_LIMIT),
    )(qkv, qkv)


def attention_forward(x, w_qkv, w_out, b_out, heads):
    """Equivalent of Attention.forward(x, mask=None).

    x:      (B, N, D) float32
    w_qkv:  (3*D, D)  -- PyTorch Linear weight layout (out_features, in_features)
    w_out:  (D, D)
    b_out:  (D,)
    """
    B, N, D = x.shape
    assert D % heads == 0, "dim must be divisible by heads"
    Dh = D // heads
    scale = D ** (-0.5)   # NOTE: the PyTorch module scales by dim**-0.5 (not dim_head**-0.5)

    # --- to_qkv (no bias): tiled/pipelined matmul on native weight layout ---
    qkv = pallas_matmul(x.reshape(B * N, D), w_qkv)     # (B*N, 3D)
    qkv = qkv.reshape(B, N, 3 * D)                      # free view, no transpose

    # --- fused per-head attention; output already in 'b n (h d)' layout ---
    out = pallas_attention(qkv, heads=heads, dim_head=Dh, scale=scale)  # (B, N, D)

    # --- to_out (with bias): tiled/pipelined matmul ---
    y = pallas_matmul_bias(out.reshape(B * N, D), w_out, b_out)
    return y.reshape(B, N, D)


# ------------------------------ reference ------------------------------------

def attention_reference(x, w_qkv, w_out, b_out, heads):
    B, N, D = x.shape
    H = heads
    Dh = D // H
    scale = D ** (-0.5)
    qkv = x @ w_qkv.T
    qkv = qkv.reshape(B, N, 3, H, Dh).transpose(2, 0, 3, 1, 4)
    q, k, v = qkv[0], qkv[1], qkv[2]
    dots = jnp.einsum('bhid,bhjd->bhij', q, k) * scale
    attn = jax.nn.softmax(dots, axis=-1)
    out = jnp.einsum('bhij,bhjd->bhid', attn, v)
    out = out.transpose(0, 2, 1, 3).reshape(B, N, D)
    return out @ w_out.T + b_out


# -------------------------------- main ----------------------------------------

if __name__ == "__main__":
    B, N, D, H = 2, 8, 32, 8

    key = jax.random.PRNGKey(0)
    kx, kqkv, kwo, kbo = jax.random.split(key, 4)
    x = jax.random.normal(kx, (B, N, D), dtype=jnp.float32)
    w_qkv = jax.random.normal(kqkv, (3 * D, D), dtype=jnp.float32) * (1.0 / math.sqrt(D))
    w_out = jax.random.normal(kwo, (D, D), dtype=jnp.float32) * (1.0 / math.sqrt(D))
    b_out = jax.random.normal(kbo, (D,), dtype=jnp.float32) * 0.01

    y = attention_forward(x, w_qkv, w_out, b_out, heads=H)
    y = jax.block_until_ready(y)

    y_ref = attention_reference(x, w_qkv, w_out, b_out, heads=H)
    assert y.shape == (B, N, D)
    # tolerance leaves headroom for the EUP approx-reciprocal softmax denominator
    assert jnp.allclose(y, y_ref, atol=1e-2, rtol=1e-2), "mismatch vs reference"

    print("KERNEL_OK")
</pallas_src>

<mosaic_0001>
module attributes {stable_mosaic.version = 11 : i64} {
  func.func @_matmul_kernel(%arg0: i32, %arg1: i32, %arg2: i32, %arg3: memref<16x32xf32, #tpu.memory_space<vmem>>, %arg4: memref<96x32xf32, #tpu.memory_space<vmem>>, %arg5: memref<16x96xf32, #tpu.memory_space<vmem>>, %arg6: memref<16x96xf32, #tpu.memory_space<vmem>>) attributes {dimension_semantics = [#tpu.dimension_semantics<parallel>, #tpu.dimension_semantics<parallel>, #tpu.dimension_semantics<arbitrary>], iteration_bounds = array<i64: 1, 1, 1>, scalar_prefetch = 0 : i64, scratch_operands = 1 : i64, tpu.core_type = #tpu.core_type<tc>, window_params = [{transform_indices = @transform_0, window_bounds = array<i64: 16, 32>}, {transform_indices = @transform_1, window_bounds = array<i64: 96, 32>}, {transform_indices = @transform_2, window_bounds = array<i64: 16, 96>}]} {
    %c0_i32 = arith.constant 0 : i32
    %0 = arith.cmpi eq, %arg2, %c0_i32 : i32
    %1 = arith.extui %0 : i1 to i32
    %c0_i32_0 = arith.constant 0 : i32
    %2 = arith.cmpi ne, %1, %c0_i32_0 : i32
    scf.if %2 {
      %cst_10 = arith.constant 0.000000e+00 : f32
      %12 = vector.broadcast %cst_10 : f32 to vector<16x96xf32>
      %c0_11 = arith.constant 0 : index
      %c0_12 = arith.constant 0 : index
      %13 = vector.load %arg6[%c0_11, %c0_12] : memref<16x96xf32, #tpu.memory_space<vmem>>, vector<16x96xf32>
      tpu.vector_store %arg6[%c0_11, %c0_12], %12 {strides = array<i32>} : memref<16x96xf32, #tpu.memory_space<vmem>>, vector<16x96xf32>,
    } else {
    }
    %c0 = arith.constant 0 : index
    %c0_1 = arith.constant 0 : index
    %3 = vector.load %arg6[%c0, %c0_1] : memref<16x96xf32, #tpu.memory_space<vmem>>, vector<16x96xf32>
    %c0_2 = arith.constant 0 : index
    %c0_3 = arith.constant 0 : index
    %4 = vector.load %arg3[%c0_2, %c0_3] : memref<16x32xf32, #tpu.memory_space<vmem>>, vector<16x32xf32>
    %c0_4 = arith.constant 0 : index
    %c0_5 = arith.constant 0 : index
    %5 = vector.load %arg4[%c0_4, %c0_5] : memref<96x32xf32, #tpu.memory_space<vmem>>, vector<96x32xf32>
    %cst = arith.constant dense<0.000000e+00> : vector<16x96xf32>
    %6 = tpu.matmul %4, %5, %cst {dimension_numbers = #tpu.dot_dimension_numbers<[1], [1], [0], [0], [0, 0, 1, 0], [], []>} : vector<16x32xf32>, vector<96x32xf32>, vector<16x96xf32> -> vector<16x96xf32>
    %7 = arith.addf %3, %6 : vector<16x96xf32>
    %c0_6 = arith.constant 0 : index
    %c0_7 = arith.constant 0 : index
    %8 = vector.load %arg6[%c0_6, %c0_7] : memref<16x96xf32, #tpu.memory_space<vmem>>, vector<16x96xf32>
    tpu.vector_store %arg6[%c0_6, %c0_7], %7 {strides = array<i32>} : memref<16x96xf32, #tpu.memory_space<vmem>>, vector<16x96xf32>,
    %c0_i32_8 = arith.constant 0 : i32
    %9 = arith.cmpi eq, %arg2, %c0_i32_8 : i32
    %10 = arith.extui %9 : i1 to i32
    %c0_i32_9 = arith.constant 0 : i32
    %11 = arith.cmpi ne, %10, %c0_i32_9 : i32
    scf.if %11 {
      %c0_10 = arith.constant 0 : index
      %c0_11 = arith.constant 0 : index
      %12 = vector.load %arg6[%c0_10, %c0_11] : memref<16x96xf32, #tpu.memory_space<vmem>>, vector<16x96xf32>
      %c0_12 = arith.constant 0 : index
      %c0_13 = arith.constant 0 : index
      %13 = vector.load %arg5[%c0_12, %c0_13] : memref<16x96xf32, #tpu.memory_space<vmem>>, vector<16x96xf32>
      tpu.vector_store %arg5[%c0_12, %c0_13], %12 {strides = array<i32>} : memref<16x96xf32, #tpu.memory_space<vmem>>, vector<16x96xf32>,
    } else {
    }
    return
  }
  func.func @transform_0(%arg0: i32, %arg1: i32, %arg2: i32) -> (i32, i32) {
    %c0_i32 = arith.constant 0 : i32
    return %arg0, %arg2 : i32, i32
  }
  func.func @transform_1(%arg0: i32, %arg1: i32, %arg2: i32) -> (i32, i32) {
    %c0_i32 = arith.constant 0 : i32
    return %arg1, %arg2 : i32, i32
  }
  func.func @transform_2(%arg0: i32, %arg1: i32, %arg2: i32) -> (i32, i32) {
    %c0_i32 = arith.constant 0 : i32
    return %arg0, %arg1 : i32, i32
  }
}

</mosaic_0001>

<llo_original>
// kernel: tpu_custom_call.1
$region0: #{tpu_custom_call.1}
  #allocation0 [shape = 'u32[]', space=smem, size = 0x4, offset = 0x4, fixed_abs, tag = 'smem constant byte address 0x4 - core index']
  #allocation1 [shape = 'u32[144,128]{1,0:T(1,128)}', space=vmem, size = 0x12000, scoped, tag = 'internal scratch']
  #allocation2 [shape = 'f32[16,96]{1,0:T(8,128)}', space=vmem, size = 0x2000, scoped, tag = 'scratch operand']
  %s0 = inlined_call_operand.hbm [shape: f32[16,32], index: 0, kind: input, shape index: {}]
  %s1 = inlined_call_operand.hbm [shape: f32[96,32], index: 1, kind: input, shape index: {}]
  %s2 = inlined_call_operand.hbm [shape: f32[16,96], index: 2, kind: output, shape index: {}]
  %s3 = sld [smem:[#allocation0]]
  $region34: #{tpu_custom_call.1} parent=0
    _
  %s5 = ssub.s32 1, %s3
  %s6 = scalar_select 0, %s5, %s3
  $region1: #{tpu_custom_call.1} parent=0
    #allocation3 [shape = 'u8[8192]{0}', space=vmem, size = 0x2000, scoped, tag = 'input window, operand 0, single buffered']
    #allocation4 [shape = 's32[1]{0}', space=sflag, size = 0x4, scoped, tag = 'scoped memory for tpu_custom_call.1']
    #allocation5 [shape = 's32[1]{0}', space=sflag, size = 0x4, scoped, tag = 'scoped memory for tpu_custom_call.1']
    #allocation6 [shape = 'u8[49152]{0}', space=vmem, size = 0xc000, scoped, tag = 'input window, operand 1, single buffered']
    #allocation7 [shape = 's32[1]{0}', space=sflag, size = 0x4, scoped, tag = 'scoped memory for tpu_custom_call.1']
    #allocation8 [shape = 'u8[8192]{0}', space=vmem, size = 0x2000, scoped, tag = 'output window, operand 0, single buffered']
    %7 = vsyncpa [#allocation4], 0
    %8 = vsyncpa [#allocation7], 0
    %9 = vsyncpa [#allocation5], 0
    // Predicated region
    $region2: #{tpu_custom_call.1} parent=1 // pred_check
      _
    $region3: #{tpu_custom_call.1} parent=1 // pred_check_branch
      %11 = sbr.rel (0) target = $region5
    $region4: #{tpu_custom_call.1} parent=1 // pred_region
      %s13 = ssub.s32 256, 256
      %14 = vsyncadd [#allocation4], %s13
      %s15 = sshll.u32 [#allocation3], 4
      %s16 = int_to_ptr.vmem [resolvable:$true] %s15
      %21 = dma.hbm_to_vmem [thread:$0]  %s0, 256, %s16, [#allocation4], 128, 128, 8
    $region5: #{tpu_custom_call.1} parent=1 // pred_fallthru
      _
    // Predicated region
    $region6: #{tpu_custom_call.1} parent=1 // pred_check
      _
    $region7: #{tpu_custom_call.1} parent=1 // pred_check_branch
      %23 = sbr.rel (0) target = $region9
    $region8: #{tpu_custom_call.1} parent=1 // pred_region
      %s25 = ssub.s32 1536, 1536
      %26 = vsyncadd [#allocation7], %s25
      %s27 = sshll.u32 [#allocation6], 4
      %s28 = int_to_ptr.vmem [resolvable:$true] %s27
      %33 = dma.hbm_to_vmem [thread:$0]  %s1, 1536, %s28, [#allocation7], 128, 128, 8
    $region9: #{tpu_custom_call.1} parent=1 // pred_fallthru
      _
    // Predicated region
    $region10: #{tpu_custom_call.1} parent=1 // pred_check
      _
    $region11: #{tpu_custom_call.1} parent=1 // pred_check_branch
      %35 = sbr.rel (0) target = $region13
    $region12: #{tpu_custom_call.1} parent=1 // pred_region
      %36 = dma.done [#allocation4], 256
    $region13: #{tpu_custom_call.1} parent=1 // pred_fallthru
      _
    // Predicated region
    $region14: #{tpu_custom_call.1} parent=1 // pred_check
      _
    $region15: #{tpu_custom_call.1} parent=1 // pred_check_branch
      %38 = sbr.rel (0) target = $region17
    $region16: #{tpu_custom_call.1} parent=1 // pred_region
      %39 = dma.done [#allocation7], 1536
    $region17: #{tpu_custom_call.1} parent=1 // pred_fallthru
      _
    %p40 = scmp.eq.s32.totalorder 0, 0
    // Predicated region
    $region18: #{tpu_custom_call.1} parent=1 // pred_check
      %p41 = pneg %p40
    $region19: #{tpu_custom_call.1} parent=1 // pred_check_branch
      %43 = sbr.rel (%p41) target = $region21
    $region20: #{tpu_custom_call.1} parent=1 // pred_region
      %vm44 = vcmask 785408
      %45 = vst.msk [vmem:[#allocation2] sm:$0xff] %vm44, 0.0
      %46 = vst.msk [vmem:[#allocation2 + $0x8] sm:$0xff] %vm44, 0.0
    $region21: #{tpu_custom_call.1} parent=1 // pred_fallthru
      _
    %v47 = vld [vmem:[#allocation2] sm:$0xff]
    %v48 = vld [vmem:[#allocation2 + $0x8] sm:$0xff]
    %v49 = vld [vmem:[#allocation3] sm:$0xff]
    %v50 = vld [vmem:[#allocation3 + $0x8] sm:$0xff]
    %v51 = vld [vmem:[#allocation6] sm:$0xff]
    %v52 = vld [vmem:[#allocation6 + $0x8] sm:$0xff]
    %v53 = vld [vmem:[#allocation6 + $0x10] sm:$0xff]
    %v54 = vld [vmem:[#allocation6 + $0x18] sm:$0xff]
    %v55 = vld [vmem:[#allocation6 + $0x20] sm:$0xff]
    %v56 = vld [vmem:[#allocation6 + $0x28] sm:$0xff]
    %v57 = vld [vmem:[#allocation6 + $0x30] sm:$0xff]
    %v58 = vld [vmem:[#allocation6 + $0x38] sm:$0xff]
    %v59 = vld [vmem:[#allocation6 + $0x40] sm:$0xff]
    %v60 = vld [vmem:[#allocation6 + $0x48] sm:$0xff]
    %v61 = vld [vmem:[#allocation6 + $0x50] sm:$0xff]
    %v62 = vld [vmem:[#allocation6 + $0x58] sm:$0xff]
    %vm63 = vcmask 261120
    %v65 = vsel %vm63, %v49, 0
    %v68 = vsel %vm63, %v50, 0
    %v71 = vsel %vm63, %v51, 0
    %v74 = vsel %vm63, %v52, 0
    %v77 = vsel %vm63, %v53, 0
    %v80 = vsel %vm63, %v54, 0
    %v83 = vsel %vm63, %v55, 0
    %v86 = vsel %vm63, %v56, 0
    %v89 = vsel %vm63, %v57, 0
    %v92 = vsel %vm63, %v58, 0
    %v95 = vsel %vm63, %v59, 0
    %v98 = vsel %vm63, %v60, 0
    %v101 = vsel %vm63, %v61, 0
    %v104 = vsel %vm63, %v62, 0
    %106 = vmatprep.subr.mxu0 0.0
    %107 = vmatpush1.xpose.msra.mxu0 %v71
    %108 = vmatprep.subr.mxu0 0.0
    %109 = vmatpush1.xpose.msra.mxu0 %v74
    %110 = vmatprep.subr.mxu0 0.0
    %111 = vmatpush1.xpose.msra.mxu0 %v77
    %112 = vmatprep.subr.mxu0 0.0
    %113 = vmatpush1.xpose.msra.mxu0 %v80
    %114 = vmatprep.subr.mxu0 0.0
    %115 = vmatpush1.xpose.msra.mxu0 %v83
    %116 = vmatprep.subr.mxu0 0.0
    %117 = vmatpush1.xpose.msra.mxu0 %v86
    %118 = vmatprep.subr.mxu0 0.0
    %119 = vmatpush1.xpose.msra.mxu0 %v89
    %120 = vmatprep.subr.mxu0 0.0
    %121 = vmatpush1.xpose.msra.mxu0 %v92
    %122 = vmatprep.subr.mxu0 0.0
    %123 = vmatpush1.xpose.msra.mxu0 %v95
    %124 = vmatprep.subr.mxu0 0.0
    %125 = vmatpush1.xpose.msra.mxu0 %v98
    %126 = vmatprep.subr.mxu0 0.0
    %127 = vmatpush1.xpose.msra.mxu0 %v101
    %128 = vmatprep.subr.mxu0 0.0
    %129 = vmatpush1.xpose.msra.mxu0 %v104
    %130 = vmatprep.subr.mxu0 0.0
    %131 = vmatpush1.xpose.msra.mxu0 0.0
    %132 = vmatprep.subr.mxu0 0.0
    %133 = vmatpush1.xpose.msra.mxu0 0.0
    %134 = vmatprep.subr.mxu0 0.0
    %135 = vmatpush1.xpose.msra.mxu0 0.0
    %136 = vmatprep.subr.mxu0 0.0
    %137 = vmatpush1.xpose.msra.mxu0 0.0
    %138 = vmatprep.subr.mxu0 0.0
    %139 = vmatpush1.xpose.msra.mxu0 0.0
    %140 = vmatprep.subr.mxu0 0.0
    %141 = vmatpush1.xpose.msra.mxu0 0.0
    %142 = vmatprep.subr.mxu0 0.0
    %143 = vmatpush1.xpose.msra.mxu0 0.0
    %144 = vmatprep.subr.mxu0 0.0
    %145 = vmatpush1.xpose.msra.mxu0 0.0
    %146 = vmatprep.subr.mxu0 0.0
    %147 = vmatpush1.xpose.msra.mxu0 0.0
    %148 = vmatprep.subr.mxu0 0.0
    %149 = vmatpush1.xpose.msra.mxu0 0.0
    %150 = vmatprep.subr.mxu0 0.0
    %151 = vmatpush1.xpose.msra.mxu0 0.0
    %152 = vmatprep.subr.mxu0 0.0
    %153 = vmatpush1.xpose.msra.mxu0 0.0
    %154 = vmatprep.subr.mxu0 0.0
    %155 = vmatpush1.xpose.msra.mxu0 0.0
    %156 = vmatprep.subr.mxu0 0.0
    %157 = vmatpush1.xpose.msra.mxu0 0.0
    %158 = vmatprep.subr.mxu0 0.0
    %159 = vmatpush1.xpose.msra.mxu0 0.0
    %160 = vmatprep.subr.mxu0 0.0
    %161 = vmatpush1.xpose.msra.mxu0 0.0
    %162 = vmatprep.subr.mxu0 0.0
    %163 = vmatpush1.xpose.msra.mxu0 0.0
    %164 = vmatprep.subr.mxu0 0.0
    %165 = vmatpush1.xpose.msra.mxu0 0.0
    %166 = vmatprep.subr.mxu0 0.0
    %167 = vmatpush1.xpose.msra.mxu0 0.0
    %168 = vmatprep.subr.mxu0 0.0
    %169 = vmatpush1.xpose.msra.mxu0 0.0
    %170 = vmatprep.mubr.f32.mxu0 0.0
    %171 = vmatmul.mubr.f32.gmra.mrb[0].mxu0 %v65
    %v172 = vpop.f32.mrb[0].mxu0
    %v173 = vadd.f32 0.0, %v172
    %v174 = vpop.f32.mrb[0].mxu0
    %175 = vmatprep.mubr.f32.mxu0 0.0
    %176 = vmatmul.mubr.f32.gmra.mrb[0].mxu0 %v68
    %v177 = vpop.f32.mrb[0].mxu0
    %v178 = vadd.f32 0.0, %v177
    %v179 = vpop.f32.mrb[0].mxu0
    %180 = vdwg.mxu0
    %v181 = vadd.f32 %v47, %v173
    %v182 = vadd.f32 %v48, %v178
    %vm183 = vcmask 785408
    %184 = vst.msk [vmem:[#allocation2] sm:$0xff] %vm183, %v181
    %185 = vst.msk [vmem:[#allocation2 + $0x8] sm:$0xff] %vm183, %v182
    // Predicated region
    $region22: #{tpu_custom_call.1} parent=1 // pred_check
      %p186 = pneg %p40
    $region23: #{tpu_custom_call.1} parent=1 // pred_check_branch
      %188 = sbr.rel (%p186) target = $region25
    $region24: #{tpu_custom_call.1} parent=1 // pred_region
      %v189 = vld [vmem:[#allocation2] sm:$0xff]
      %v190 = vld [vmem:[#allocation2 + $0x8] sm:$0xff]
      %191 = vst.msk [vmem:[#allocation8] sm:$0xff] %vm183, %v189
      %192 = vst.msk [vmem:[#allocation8 + $0x8] sm:$0xff] %vm183, %v190
    $region25: #{tpu_custom_call.1} parent=1 // pred_fallthru
      _
    // Predicated region
    $region26: #{tpu_custom_call.1} parent=1 // pred_check
      _
    $region27: #{tpu_custom_call.1} parent=1 // pred_check_branch
      %194 = sbr.rel (0) target = $region29
    $region28: #{tpu_custom_call.1} parent=1 // pred_region
      %s196 = ssub.s32 256, 256
      %197 = vsyncadd [#allocation5], %s196
      %s198 = sshll.u32 [#allocation8], 4
      %s199 = int_to_ptr.vmem [resolvable:$true] %s198
      %204 = dma.vmem_to_hbm [thread:$0]  %s199, 256, %s2, [#allocation5], 128, 128, 8
    $region29: #{tpu_custom_call.1} parent=1 // pred_fallthru
      _
    // Predicated region
    $region30: #{tpu_custom_call.1} parent=1 // pred_check
      _
    $region31: #{tpu_custom_call.1} parent=1 // pred_check_branch
      %206 = sbr.rel (0) target = $region33
    $region32: #{tpu_custom_call.1} parent=1 // pred_region
      %207 = dma.done [#allocation5], 256
    $region33: #{tpu_custom_call.1} parent=1 // pred_fallthru
      _
    %208 = vsyncpa [#allocation4], 1
    %209 = vsyncpa [#allocation7], 1
    %210 = vsyncpa [#allocation5], 1

</llo_original>
